<compile_context>
chip_gen: v7x
topology: tpu7x:2x2x1
jax: 0.10.0
libtpu: 0.0.40
codegen_flags: <defaults>
</compile_context>

<pallas_src>
import math
import jax
import jax.numpy as jnp
from jax.experimental import pallas as pl
from jax.experimental.pallas import tpu as pltpu

D_IN = 32                # original feature width (LayerNorm dim)
D_HID = 64               # hidden width
PACK = 4                 # original rows packed per 128-lane vreg row
D_IN_P = D_IN * PACK     # 128
D_HID_P = D_HID * PACK   # 256
D_STAT = 2 * D_IN_P      # 256  ([mean | E[x^2]] width)
LN_EPS = 1e-5
TM_MAX = 512             # max packed rows per grid step (512x128 f32 = 256 KiB)
STEPS_TARGET = 8         # aim for >= this many grid steps (megacore/pipelining)


def _fc_kernel(x_ref, avg2_ref, w1_ref, b1_ref, w2_ref, b2_ref, o_ref):
    """One (tm, 128) block: each 32-lane group is one original row."""
    x = x_ref[...].astype(jnp.float32)                        # (tm, 128)

    # --- LayerNorm statistics on the MXU (merged mean / E[x^2] matmul). ---
    xb = x.astype(jnp.bfloat16)
    xxb = (x * x).astype(jnp.bfloat16)
    stat_in = jnp.concatenate([xb, xxb], axis=-1)              # (tm, 256) bf16
    stats = jnp.dot(stat_in, avg2_ref[...],
                    preferred_element_type=jnp.float32)        # (tm, 256) f32
    mean = stats[:, :D_IN_P]
    ex2 = stats[:, D_IN_P:]
    var = jnp.maximum(ex2 - mean * mean, 0.0)                  # guard cancellation
    xn = (x - mean) * jax.lax.rsqrt(var + LN_EPS)
    # LayerNorm affine (gamma, beta) is folded into W1 / b1 by pack_params().

    # --- Linear(32->64) + ReLU (block-diagonal packed). ---
    h = jnp.dot(xn.astype(jnp.bfloat16), w1_ref[...],
                preferred_element_type=jnp.float32) + b1_ref[...]
    h = jnp.maximum(h, 0.0)

    # --- Linear(64->32) (block-diagonal packed). ---
    y = jnp.dot(h.astype(jnp.bfloat16), w2_ref[...],
                preferred_element_type=jnp.float32) + b2_ref[...]

    # Dropout(p=0.1): identity in eval mode.
    # TODO(synk): training-mode dropout (pltpu.prng_*) not implemented.

    # Residual with the ORIGINAL (pre-norm) input; lane-dense 128-wide store.
    o_ref[...] = (y + x).astype(o_ref.dtype)


def pack_params(params):
    """One-time packing: fold LN affine into W1/b1 and build block-diag weights."""
    w1, b1, w2, b2, gamma, beta = params
    w1 = w1.astype(jnp.float32)
    b1 = b1.astype(jnp.float32)
    w2 = w2.astype(jnp.float32)
    b2 = b2.astype(jnp.float32)
    gamma = gamma.astype(jnp.float32)
    beta = beta.astype(jnp.float32)

    # Fold LN affine: (g*xn + b) @ W1 + b1 == xn @ (diag(g)@W1) + (b@W1 + b1)
    w1f = gamma.reshape(D_IN, 1) * w1                          # (32, 64)
    b1f = beta.reshape(1, D_IN) @ w1 + b1                      # (1, 64)

    eye = jnp.eye(PACK, dtype=jnp.float32)
    avg = jnp.kron(eye, jnp.full((D_IN, D_IN), 1.0 / D_IN, jnp.float32))  # (128,128)
    avg2 = jnp.kron(jnp.eye(2, dtype=jnp.float32), avg)                   # (256,256)

    w1_bd = jnp.kron(eye, w1f)                                 # (128, 256)
    w2_bd = jnp.kron(eye, w2)                                  # (256, 128)
    b1_t = jnp.tile(b1f, (1, PACK))                            # (1, 256) f32
    b2_t = jnp.tile(b2.reshape(1, D_IN), (1, PACK))            # (1, 128) f32

    # bf16 MXU operands (MXU truncates f32 to bf16 at default precision anyway);
    # biases stay f32 for the VPU adds / f32 accumulation path.
    return (avg2.astype(jnp.bfloat16), w1_bd.astype(jnp.bfloat16),
            b1_t, w2_bd.astype(jnp.bfloat16), b2_t)


def full_connection_output(x, packed):
    """x: (..., 32) float32 -> same shape."""
    avg2, w1_bd, b1_t, w2_bd, b2_t = packed
    orig_shape = x.shape
    m = int(math.prod(orig_shape[:-1]))
    x2d = x.reshape(m, D_IN)

    # Pad only to one packed sublane tile (PACK*8 = 32 original rows).
    row_tile = PACK * 8
    m_pad = ((m + row_tile - 1) // row_tile) * row_tile
    if m_pad != m:
        x2d = jnp.pad(x2d, ((0, m_pad - m), (0, 0)))
    mp = m_pad // PACK                         # packed rows (multiple of 8)
    xp = x2d.reshape(mp, D_IN_P)               # free row-major reinterpret

    # Adaptive tile: <= TM_MAX packed rows, aim for >= STEPS_TARGET grid steps.
    tm = -(-mp // STEPS_TARGET)                # ceil
    tm = ((tm + 7) // 8) * 8                   # sublane multiple
    tm = max(8, min(TM_MAX, tm, mp))
    grid = (pl.cdiv(mp, tm),)                  # partial last block: writeback masked

    # Advisory cost estimate: actual executed work (block-diag padding included).
    flops = mp * 2 * (D_STAT * D_STAT + D_IN_P * D_HID_P + D_HID_P * D_IN_P)
    transcendentals = mp * D_IN_P              # rsqrt per lane
    bytes_accessed = (2 * mp * D_IN_P * 4                              # x in + out (f32)
                      + 2 * (D_STAT * D_STAT + 2 * D_IN_P * D_HID_P)   # bf16 weights
                      + 4 * (D_HID_P + D_IN_P))                        # f32 biases

    out_packed = pl.pallas_call(
        _fc_kernel,
        out_shape=jax.ShapeDtypeStruct((mp, D_IN_P), x.dtype),
        grid=grid,
        in_specs=[
            pl.BlockSpec((tm, D_IN_P), lambda i: (i, 0)),        # activations (streamed)
            pl.BlockSpec((D_STAT, D_STAT), lambda i: (0, 0)),    # blockdiag(avg,avg), resident
            pl.BlockSpec((D_IN_P, D_HID_P), lambda i: (0, 0)),   # W1 block-diag (LN affine folded)
            pl.BlockSpec((1, D_HID_P), lambda i: (0, 0)),        # b1 (folded)
            pl.BlockSpec((D_HID_P, D_IN_P), lambda i: (0, 0)),   # W2 block-diag
            pl.BlockSpec((1, D_IN_P), lambda i: (0, 0)),         # b2
        ],
        out_specs=pl.BlockSpec((tm, D_IN_P), lambda i: (i, 0)),
        compiler_params=pltpu.CompilerParams(
            dimension_semantics=("parallel",),
            vmem_limit_bytes=32 * 1024 * 1024),
        cost_estimate=pl.CostEstimate(
            flops=flops, transcendentals=transcendentals,
            bytes_accessed=bytes_accessed),
    )(xp, avg2, w1_bd, b1_t, w2_bd, b2_t)

    out = out_packed.reshape(m_pad, D_IN)[:m]
    return out.reshape(orig_shape)


def init_params(key):
    """Deterministic init mimicking nn.Linear default (uniform +/- 1/sqrt(fan_in))."""
    k1, k2, k3, k4 = jax.random.split(key, 4)
    bound1 = 1.0 / math.sqrt(D_IN)
    bound2 = 1.0 / math.sqrt(D_HID)
    # stored as (in_features, out_features)
    w1 = jax.random.uniform(k1, (D_IN, D_HID), jnp.float32, -bound1, bound1)
    b1 = jax.random.uniform(k2, (1, D_HID), jnp.float32, -bound1, bound1)
    w2 = jax.random.uniform(k3, (D_HID, D_IN), jnp.float32, -bound2, bound2)
    b2 = jax.random.uniform(k4, (1, D_IN), jnp.float32, -bound2, bound2)
    gamma = jnp.ones((1, D_IN), jnp.float32)   # LayerNorm weight
    beta = jnp.zeros((1, D_IN), jnp.float32)   # LayerNorm bias
    return w1, b1, w2, b2, gamma, beta


def _reference(x, params):
    """Pure-JAX (f32) reference for correctness check."""
    w1, b1, w2, b2, gamma, beta = params
    mean = jnp.mean(x, axis=-1, keepdims=True)
    var = jnp.mean((x - mean) ** 2, axis=-1, keepdims=True)
    xn = (x - mean) / jnp.sqrt(var + LN_EPS) * gamma[0] + beta[0]
    h = jnp.maximum(xn @ w1 + b1[0], 0.0)
    y = h @ w2 + b2[0]
    return y + x


if __name__ == "__main__":
    key = jax.random.PRNGKey(0)
    kx, kp = jax.random.split(key)

    B, S = 2, 8
    x = jax.random.normal(kx, (B, S, D_IN), jnp.float32)
    params = init_params(kp)
    packed = pack_params(params)           # one-time packing (not per call)

    out = full_connection_output(x, packed)
    out = jax.block_until_ready(out)

    ref = _reference(x, params)
    assert out.shape == x.shape
    # Tolerance accounts for bf16 MXU operand truncation (default matmul precision).
    assert jnp.allclose(out, ref, atol=2e-2, rtol=2e-2), "mismatch vs reference"

    print("KERNEL_OK")
</pallas_src>

<mosaic_0001>
module attributes {stable_mosaic.version = 11 : i64} {
  func.func @_fc_kernel(%arg0: i32, %arg1: memref<8x128xf32, #tpu.memory_space<vmem>>, %arg2: memref<256x256xbf16, #tpu.memory_space<vmem>>, %arg3: memref<128x256xbf16, #tpu.memory_space<vmem>>, %arg4: memref<1x256xf32, #tpu.memory_space<vmem>>, %arg5: memref<256x128xbf16, #tpu.memory_space<vmem>>, %arg6: memref<1x128xf32, #tpu.memory_space<vmem>>, %arg7: memref<8x128xf32, #tpu.memory_space<vmem>>) attributes {dimension_semantics = [#tpu.dimension_semantics<parallel>], iteration_bounds = array<i64: 1>, scalar_prefetch = 0 : i64, scratch_operands = 0 : i64, tpu.core_type = #tpu.core_type<tc>, window_params = [{transform_indices = @transform_0, window_bounds = array<i64: 8, 128>}, {pipeline_mode = #tpu.pipeline_mode<synchronous>, transform_indices = @transform_1, window_bounds = array<i64: 256, 256>}, {pipeline_mode = #tpu.pipeline_mode<synchronous>, transform_indices = @transform_2, window_bounds = array<i64: 128, 256>}, {pipeline_mode = #tpu.pipeline_mode<synchronous>, transform_indices = @transform_3, window_bounds = array<i64: 1, 256>}, {pipeline_mode = #tpu.pipeline_mode<synchronous>, transform_indices = @transform_4, window_bounds = array<i64: 256, 128>}, {pipeline_mode = #tpu.pipeline_mode<synchronous>, transform_indices = @transform_5, window_bounds = array<i64: 1, 128>}, {transform_indices = @transform_6, window_bounds = array<i64: 8, 128>}]} {
    %c0 = arith.constant 0 : index
    %c0_0 = arith.constant 0 : index
    %0 = vector.load %arg1[%c0, %c0_0] : memref<8x128xf32, #tpu.memory_space<vmem>>, vector<8x128xf32>
    %1 = arith.truncf %0 : vector<8x128xf32> to vector<8x128xbf16>
    %2 = arith.mulf %0, %0 : vector<8x128xf32>
    %3 = arith.truncf %2 : vector<8x128xf32> to vector<8x128xbf16>
    %4 = tpu.concatenate %1, %3 in 1 : vector<8x128xbf16>, vector<8x128xbf16> -> vector<8x256xbf16>
    %c0_1 = arith.constant 0 : index
    %c0_2 = arith.constant 0 : index
    %5 = vector.load %arg2[%c0_1, %c0_2] : memref<256x256xbf16, #tpu.memory_space<vmem>>, vector<256x256xbf16>
    %cst = arith.constant dense<0.000000e+00> : vector<8x256xf32>
    %6 = tpu.matmul %4, %5, %cst {dimension_numbers = #tpu.dot_dimension_numbers<[1], [0], [0], [1], [0, 0, 1, 1], [], []>} : vector<8x256xbf16>, vector<256x256xbf16>, vector<8x256xf32> -> vector<8x256xf32>
    %7 = vector.extract_strided_slice %6 {offsets = [0, 0], sizes = [8, 128], strides = [1, 1]} : vector<8x256xf32> to vector<8x128xf32>
    %8 = vector.extract_strided_slice %6 {offsets = [0, 128], sizes = [8, 128], strides = [1, 1]} : vector<8x256xf32> to vector<8x128xf32>
    %9 = arith.mulf %7, %7 : vector<8x128xf32>
    %10 = arith.subf %8, %9 : vector<8x128xf32>
    %cst_3 = arith.constant 0.000000e+00 : f32
    %11 = vector.broadcast %cst_3 : f32 to vector<8x128xf32>
    %12 = arith.maximumf %10, %11 : vector<8x128xf32>
    %13 = arith.subf %0, %7 : vector<8x128xf32>
    %cst_4 = arith.constant 9.99999974E-6 : f32
    %14 = vector.broadcast %cst_4 : f32 to vector<8x128xf32>
    %15 = arith.addf %12, %14 : vector<8x128xf32>
    %16 = math.rsqrt %15 : vector<8x128xf32>
    %17 = arith.mulf %13, %16 : vector<8x128xf32>
    %18 = arith.truncf %17 : vector<8x128xf32> to vector<8x128xbf16>
    %c0_5 = arith.constant 0 : index
    %c0_6 = arith.constant 0 : index
    %19 = vector.load %arg3[%c0_5, %c0_6] : memref<128x256xbf16, #tpu.memory_space<vmem>>, vector<128x256xbf16>
    %cst_7 = arith.constant dense<0.000000e+00> : vector<8x256xf32>
    %20 = tpu.matmul %18, %19, %cst_7 {dimension_numbers = #tpu.dot_dimension_numbers<[1], [0], [0], [1], [0, 0, 1, 1], [], []>} : vector<8x128xbf16>, vector<128x256xbf16>, vector<8x256xf32> -> vector<8x256xf32>
    %c0_8 = arith.constant 0 : index
    %c0_9 = arith.constant 0 : index
    %21 = vector.load %arg4[%c0_8, %c0_9] : memref<1x256xf32, #tpu.memory_space<vmem>>, vector<1x256xf32>
    %22 = vector.broadcast %21 : vector<1x256xf32> to vector<8x256xf32>
    %23 = arith.addf %20, %22 : vector<8x256xf32>
    %cst_10 = arith.constant 0.000000e+00 : f32
    %24 = vector.broadcast %cst_10 : f32 to vector<8x256xf32>
    %25 = arith.maximumf %23, %24 : vector<8x256xf32>
    %26 = arith.truncf %25 : vector<8x256xf32> to vector<8x256xbf16>
    %c0_11 = arith.constant 0 : index
    %c0_12 = arith.constant 0 : index
    %27 = vector.load %arg5[%c0_11, %c0_12] : memref<256x128xbf16, #tpu.memory_space<vmem>>, vector<256x128xbf16>
    %cst_13 = arith.constant dense<0.000000e+00> : vector<8x128xf32>
    %28 = tpu.matmul %26, %27, %cst_13 {dimension_numbers = #tpu.dot_dimension_numbers<[1], [0], [0], [1], [0, 0, 1, 1], [], []>} : vector<8x256xbf16>, vector<256x128xbf16>, vector<8x128xf32> -> vector<8x128xf32>
    %c0_14 = arith.constant 0 : index
    %c0_15 = arith.constant 0 : index
    %29 = vector.load %arg6[%c0_14, %c0_15] : memref<1x128xf32, #tpu.memory_space<vmem>>, vector<1x128xf32>
    %30 = vector.broadcast %29 : vector<1x128xf32> to vector<8x128xf32>
    %31 = arith.addf %28, %30 : vector<8x128xf32>
    %32 = arith.addf %31, %0 : vector<8x128xf32>
    %c0_16 = arith.constant 0 : index
    %c0_17 = arith.constant 0 : index
    %33 = vector.load %arg7[%c0_16, %c0_17] : memref<8x128xf32, #tpu.memory_space<vmem>>, vector<8x128xf32>
    tpu.vector_store %arg7[%c0_16, %c0_17], %32 {strides = array<i32>} : memref<8x128xf32, #tpu.memory_space<vmem>>, vector<8x128xf32>,
    return
  }
  func.func @transform_0(%arg0: i32) -> (i32, i32) {
    %c0_i32 = arith.constant 0 : i32
    %c0_i32_0 = arith.constant 0 : i32
    return %arg0, %c0_i32 : i32, i32
  }
  func.func @transform_1(%arg0: i32) -> (i32, i32) {
    %c0_i32 = arith.constant 0 : i32
    %c0_i32_0 = arith.constant 0 : i32
    %c0_i32_1 = arith.constant 0 : i32
    return %c0_i32, %c0_i32_0 : i32, i32
  }
  func.func @transform_2(%arg0: i32) -> (i32, i32) {
    %c0_i32 = arith.constant 0 : i32
    %c0_i32_0 = arith.constant 0 : i32
    %c0_i32_1 = arith.constant 0 : i32
    return %c0_i32, %c0_i32_0 : i32, i32
  }
  func.func @transform_3(%arg0: i32) -> (i32, i32) {
    %c0_i32 = arith.constant 0 : i32
    %c0_i32_0 = arith.constant 0 : i32
    %c0_i32_1 = arith.constant 0 : i32
    return %c0_i32, %c0_i32_0 : i32, i32
  }
  func.func @transform_4(%arg0: i32) -> (i32, i32) {
    %c0_i32 = arith.constant 0 : i32
    %c0_i32_0 = arith.constant 0 : i32
    %c0_i32_1 = arith.constant 0 : i32
    return %c0_i32, %c0_i32_0 : i32, i32
  }
  func.func @transform_5(%arg0: i32) -> (i32, i32) {
    %c0_i32 = arith.constant 0 : i32
    %c0_i32_0 = arith.constant 0 : i32
    %c0_i32_1 = arith.constant 0 : i32
    return %c0_i32, %c0_i32_0 : i32, i32
  }
  func.func @transform_6(%arg0: i32) -> (i32, i32) {
    %c0_i32 = arith.constant 0 : i32
    %c0_i32_0 = arith.constant 0 : i32
    return %arg0, %c0_i32 : i32, i32
  }
}

</mosaic_0001>

<llo_original>
// kernel: tpu_custom_call.1
$region0: #{tpu_custom_call.1}
  #allocation0 [shape = 'u32[]', space=smem, size = 0x4, offset = 0x4, fixed_abs, tag = 'smem constant byte address 0x4 - core index']
  #allocation1 [shape = 'u32[144,128]{1,0:T(1,128)}', space=vmem, size = 0x12000, scoped, tag = 'internal scratch']
  %s0 = inlined_call_operand.hbm [shape: f32[8,128], index: 0, kind: input, shape index: {}]
  %s1 = inlined_call_operand.hbm [shape: bf16[256,256], index: 1, kind: input, shape index: {}]
  %s2 = inlined_call_operand.hbm [shape: bf16[128,256], index: 2, kind: input, shape index: {}]
  %s3 = inlined_call_operand.vmem [shape: f32[1,256], index: 3, kind: input, shape index: {}]
  %s4 = inlined_call_operand.hbm [shape: bf16[256,128], index: 4, kind: input, shape index: {}]
  %s5 = inlined_call_operand.vmem [shape: f32[1,128], index: 5, kind: input, shape index: {}]
  %s6 = inlined_call_operand.hbm [shape: f32[8,128], index: 6, kind: output, shape index: {}]
  %s7 = sld [smem:[#allocation0]]
  $region50: #{tpu_custom_call.1} parent=0
    _
  %s9 = ssub.s32 1, %s7
  %s10 = scalar_select 0, %s9, %s7
  $region1: #{tpu_custom_call.1} parent=0
    #allocation2 [shape = 'u8[4096]{0}', space=vmem, size = 0x1000, scoped, tag = 'input window, operand 0, single buffered']
    #allocation3 [shape = 's32[1]{0}', space=sflag, size = 0x4, scoped, tag = 'scoped memory for tpu_custom_call.1']
    #allocation4 [shape = 's32[1]{0}', space=sflag, size = 0x4, scoped, tag = 'scoped memory for tpu_custom_call.1']
    #allocation5 [shape = 'u8[131072]{0}', space=vmem, size = 0x20000, scoped, tag = 'input window, operand 1, single buffered']
    #allocation6 [shape = 's32[1]{0}', space=sflag, size = 0x4, scoped, tag = 'scoped memory for tpu_custom_call.1']
    #allocation7 [shape = 'u8[65536]{0}', space=vmem, size = 0x10000, scoped, tag = 'input window, operand 2, single buffered']
    #allocation8 [shape = 'u8[65536]{0}', space=vmem, size = 0x10000, scoped, tag = 'input window, operand 4, single buffered']
    #allocation9 [shape = 's32[1]{0}', space=sflag, size = 0x4, scoped, tag = 'scoped memory for tpu_custom_call.1']
    #allocation10 [shape = 'u8[4096]{0}', space=vmem, size = 0x1000, scoped, tag = 'output window, operand 0, single buffered']
    %11 = vsyncpa [#allocation3], 0
    %12 = vsyncpa [#allocation6], 0
    %13 = vsyncpa [#allocation9], 0
    %14 = vsyncpa [#allocation4], 0
    // Predicated region
    $region2: #{tpu_custom_call.1} parent=1 // pred_check
      _
    $region3: #{tpu_custom_call.1} parent=1 // pred_check_branch
      %16 = sbr.rel (0) target = $region5
    $region4: #{tpu_custom_call.1} parent=1 // pred_region
      %s18 = ssub.s32 128, 128
      %19 = vsyncadd [#allocation3], %s18
      %s21 = sshll.u32 [#allocation2], 4
      %s22 = int_to_ptr.vmem [resolvable:$true] %s21
      %24 = dma.hbm_to_vmem [thread:$0]  %s0, 128, %s22, [#allocation3]
    $region5: #{tpu_custom_call.1} parent=1 // pred_fallthru
      _
    // Predicated region
    $region6: #{tpu_custom_call.1} parent=1 // pred_check
      _
    $region7: #{tpu_custom_call.1} parent=1 // pred_check_branch
      %26 = sbr.rel (0) target = $region9
    $region8: #{tpu_custom_call.1} parent=1 // pred_region
      %s28 = ssub.s32 4096, 4096
      %29 = vsyncadd [#allocation6], %s28
      %s30 = sshll.u32 [#allocation5], 4
      %s31 = int_to_ptr.vmem [resolvable:$true] %s30
      %36 = dma.hbm_to_vmem [thread:$0]  %s1, 4096, %s31, [#allocation6], 128, 128, 8
    $region9: #{tpu_custom_call.1} parent=1 // pred_fallthru
      _
    // Predicated region
    $region10: #{tpu_custom_call.1} parent=1 // pred_check
      _
    $region11: #{tpu_custom_call.1} parent=1 // pred_check_branch
      %38 = sbr.rel (0) target = $region13
    $region12: #{tpu_custom_call.1} parent=1 // pred_region
      %s40 = ssub.s32 2048, 2048
      %41 = vsyncadd [#allocation6], %s40
      %s42 = sshll.u32 [#allocation7], 4
      %s43 = int_to_ptr.vmem [resolvable:$true] %s42
      %48 = dma.hbm_to_vmem [thread:$0]  %s2, 2048, %s43, [#allocation6], 128, 128, 8
    $region13: #{tpu_custom_call.1} parent=1 // pred_fallthru
      _
    // Predicated region
    $region14: #{tpu_custom_call.1} parent=1 // pred_check
      _
    $region15: #{tpu_custom_call.1} parent=1 // pred_check_branch
      %50 = sbr.rel (0) target = $region17
    $region16: #{tpu_custom_call.1} parent=1 // pred_region
      _
    $region17: #{tpu_custom_call.1} parent=1 // pred_fallthru
      _
    // Predicated region
    $region18: #{tpu_custom_call.1} parent=1 // pred_check
      _
    $region19: #{tpu_custom_call.1} parent=1 // pred_check_branch
      %52 = sbr.rel (0) target = $region21
    $region20: #{tpu_custom_call.1} parent=1 // pred_region
      %s54 = ssub.s32 2048, 2048
      %55 = vsyncadd [#allocation9], %s54
      %s56 = sshll.u32 [#allocation8], 4
      %s57 = int_to_ptr.vmem [resolvable:$true] %s56
      %62 = dma.hbm_to_vmem [thread:$0]  %s4, 2048, %s57, [#allocation9], 64, 64, 4
    $region21: #{tpu_custom_call.1} parent=1 // pred_fallthru
      _
    // Predicated region
    $region22: #{tpu_custom_call.1} parent=1 // pred_check
      _
    $region23: #{tpu_custom_call.1} parent=1 // pred_check_branch
      %64 = sbr.rel (0) target = $region25
    $region24: #{tpu_custom_call.1} parent=1 // pred_region
      _
    $region25: #{tpu_custom_call.1} parent=1 // pred_fallthru
      _
    // Predicated region
    $region26: #{tpu_custom_call.1} parent=1 // pred_check
      _
    $region27: #{tpu_custom_call.1} parent=1 // pred_check_branch
      %66 = sbr.rel (0) target = $region29
    $region28: #{tpu_custom_call.1} parent=1 // pred_region
      %67 = dma.done [#allocation3], 128
    $region29: #{tpu_custom_call.1} parent=1 // pred_fallthru
      _
    // Predicated region
    $region30: #{tpu_custom_call.1} parent=1 // pred_check
      _
    $region31: #{tpu_custom_call.1} parent=1 // pred_check_branch
      %69 = sbr.rel (0) target = $region33
    $region32: #{tpu_custom_call.1} parent=1 // pred_region
      %70 = dma.done [#allocation6], 4096
    $region33: #{tpu_custom_call.1} parent=1 // pred_fallthru
      _
    // Predicated region
    $region34: #{tpu_custom_call.1} parent=1 // pred_check
      _
    $region35: #{tpu_custom_call.1} parent=1 // pred_check_branch
      %72 = sbr.rel (0) target = $region37
    $region36: #{tpu_custom_call.1} parent=1 // pred_region
      %73 = dma.done [#allocation6], 2048
    $region37: #{tpu_custom_call.1} parent=1 // pred_fallthru
      _
    // Predicated region
    $region38: #{tpu_custom_call.1} parent=1 // pred_check
      _
    $region39: #{tpu_custom_call.1} parent=1 // pred_check_branch
      %75 = sbr.rel (0) target = $region41
    $region40: #{tpu_custom_call.1} parent=1 // pred_region
      %76 = dma.done [#allocation9], 2048
    $region41: #{tpu_custom_call.1} parent=1 // pred_fallthru
      _
    %v78 = vld [vmem:[#allocation2] sm:$0xff]
    %v79 = vpack.c.bf16 %v78, %v78
    %v80 = vmul.f32 %v78, %v78
    %v81 = vpack.c.bf16 %v80, %v80
    %v82 = vld [vmem:[#allocation5] sm:$0xff]
    %v83 = vld [vmem:[#allocation5 + $0x8] sm:$0xff]
    %v84 = vld [vmem:[#allocation5 + $0x10] sm:$0xff]
    %v85 = vld [vmem:[#allocation5 + $0x18] sm:$0xff]
    %v86 = vld [vmem:[#allocation5 + $0x20] sm:$0xff]
    %v87 = vld [vmem:[#allocation5 + $0x28] sm:$0xff]
    %v88 = vld [vmem:[#allocation5 + $0x30] sm:$0xff]
    %v89 = vld [vmem:[#allocation5 + $0x38] sm:$0xff]
    %v90 = vld [vmem:[#allocation5 + $0x40] sm:$0xff]
    %v91 = vld [vmem:[#allocation5 + $0x48] sm:$0xff]
    %v92 = vld [vmem:[#allocation5 + $0x50] sm:$0xff]
    %v93 = vld [vmem:[#allocation5 + $0x58] sm:$0xff]
    %v94 = vld [vmem:[#allocation5 + $0x60] sm:$0xff]
    %v95 = vld [vmem:[#allocation5 + $0x68] sm:$0xff]
    %v96 = vld [vmem:[#allocation5 + $0x70] sm:$0xff]
    %v97 = vld [vmem:[#allocation5 + $0x78] sm:$0xff]
    %v98 = vld [vmem:[#allocation5 + $0x80] sm:$0xff]
    %v99 = vld [vmem:[#allocation5 + $0x88] sm:$0xff]
    %v100 = vld [vmem:[#allocation5 + $0x90] sm:$0xff]
    %v101 = vld [vmem:[#allocation5 + $0x98] sm:$0xff]
    %v102 = vld [vmem:[#allocation5 + $0xa0] sm:$0xff]
    %v103 = vld [vmem:[#allocation5 + $0xa8] sm:$0xff]
    %v104 = vld [vmem:[#allocation5 + $0xb0] sm:$0xff]
    %v105 = vld [vmem:[#allocation5 + $0xb8] sm:$0xff]
    %v106 = vld [vmem:[#allocation5 + $0xc0] sm:$0xff]
    %v107 = vld [vmem:[#allocation5 + $0xc8] sm:$0xff]
    %v108 = vld [vmem:[#allocation5 + $0xd0] sm:$0xff]
    %v109 = vld [vmem:[#allocation5 + $0xd8] sm:$0xff]
    %v110 = vld [vmem:[#allocation5 + $0xe0] sm:$0xff]
    %v111 = vld [vmem:[#allocation5 + $0xe8] sm:$0xff]
    %v112 = vld [vmem:[#allocation5 + $0xf0] sm:$0xff]
    %v113 = vld [vmem:[#allocation5 + $0xf8] sm:$0xff]
    %v146 = vunpack.c.l.b16 %v82
    %v147 = vunpack.c.h.b16 %v82
    %v148 = vunpack.c.l.b16 %v83
    %v149 = vunpack.c.h.b16 %v83
    %v150 = vunpack.c.l.b16 %v84
    %v151 = vunpack.c.h.b16 %v84
    %v152 = vunpack.c.l.b16 %v85
    %v153 = vunpack.c.h.b16 %v85
    %v154 = vunpack.c.l.b16 %v86
    %v155 = vunpack.c.h.b16 %v86
    %v156 = vunpack.c.l.b16 %v87
    %v157 = vunpack.c.h.b16 %v87
    %v158 = vunpack.c.l.b16 %v88
    %v159 = vunpack.c.h.b16 %v88
    %v160 = vunpack.c.l.b16 %v89
    %v161 = vunpack.c.h.b16 %v89
    %v162 = vunpack.c.l.b16 %v90
    %v163 = vunpack.c.h.b16 %v90
    %v164 = vunpack.c.l.b16 %v91
    %v165 = vunpack.c.h.b16 %v91
    %v166 = vunpack.c.l.b16 %v92
    %v167 = vunpack.c.h.b16 %v92
    %v168 = vunpack.c.l.b16 %v93
    %v169 = vunpack.c.h.b16 %v93
    %v170 = vunpack.c.l.b16 %v94
    %v171 = vunpack.c.h.b16 %v94
    %v172 = vunpack.c.l.b16 %v95
    %v173 = vunpack.c.h.b16 %v95
    %v174 = vunpack.c.l.b16 %v96
    %v175 = vunpack.c.h.b16 %v96
    %v176 = vunpack.c.l.b16 %v97
    %v177 = vunpack.c.h.b16 %v97
    %v178 = vunpack.c.l.b16 %v98
    %v179 = vunpack.c.h.b16 %v98
    %v180 = vunpack.c.l.b16 %v99
    %v181 = vunpack.c.h.b16 %v99
    %v182 = vunpack.c.l.b16 %v100
    %v183 = vunpack.c.h.b16 %v100
    %v184 = vunpack.c.l.b16 %v101
    %v185 = vunpack.c.h.b16 %v101
    %v186 = vunpack.c.l.b16 %v102
    %v187 = vunpack.c.h.b16 %v102
    %v188 = vunpack.c.l.b16 %v103
    %v189 = vunpack.c.h.b16 %v103
    %v190 = vunpack.c.l.b16 %v104
    %v191 = vunpack.c.h.b16 %v104
    %v192 = vunpack.c.l.b16 %v105
    %v193 = vunpack.c.h.b16 %v105
    %v194 = vunpack.c.l.b16 %v106
    %v195 = vunpack.c.h.b16 %v106
    %v196 = vunpack.c.l.b16 %v107
    %v197 = vunpack.c.h.b16 %v107
    %v198 = vunpack.c.l.b16 %v108
    %v199 = vunpack.c.h.b16 %v108
    %v200 = vunpack.c.l.b16 %v109
    %v201 = vunpack.c.h.b16 %v109
    %v202 = vunpack.c.l.b16 %v110
    %v203 = vunpack.c.h.b16 %v110
    %v204 = vunpack.c.l.b16 %v111
    %v205 = vunpack.c.h.b16 %v111
    %v206 = vunpack.c.l.b16 %v112
    %v207 = vunpack.c.h.b16 %v112
    %v208 = vunpack.c.l.b16 %v113
    %v209 = vunpack.c.h.b16 %v113
    %v210 = vpack.c.b16 %v148, %v146
    %v211 = vpack.c.b16 %v149, %v147
    %v212 = vpack.c.b16 %v152, %v150
    %v213 = vpack.c.b16 %v153, %v151
    %v214 = vpack.c.b16 %v156, %v154
    %v215 = vpack.c.b16 %v157, %v155
    %v216 = vpack.c.b16 %v160, %v158
    %v217 = vpack.c.b16 %v161, %v159
    %v218 = vpack.c.b16 %v164, %v162
    %v219 = vpack.c.b16 %v165, %v163
    %v220 = vpack.c.b16 %v168, %v166
    %v221 = vpack.c.b16 %v169, %v167
    %v222 = vpack.c.b16 %v172, %v170
    %v223 = vpack.c.b16 %v173, %v171
    %v224 = vpack.c.b16 %v176, %v174
    %v225 = vpack.c.b16 %v177, %v175
    %v226 = vpack.c.b16 %v180, %v178
    %v227 = vpack.c.b16 %v181, %v179
    %v228 = vpack.c.b16 %v184, %v182
    %v229 = vpack.c.b16 %v185, %v183
    %v230 = vpack.c.b16 %v188, %v186
    %v231 = vpack.c.b16 %v189, %v187
    %v232 = vpack.c.b16 %v192, %v190
    %v233 = vpack.c.b16 %v193, %v191
    %v234 = vpack.c.b16 %v196, %v194
    %v235 = vpack.c.b16 %v197, %v195
    %v236 = vpack.c.b16 %v200, %v198
    %v237 = vpack.c.b16 %v201, %v199
    %v238 = vpack.c.b16 %v204, %v202
    %v239 = vpack.c.b16 %v205, %v203
    %v240 = vpack.c.b16 %v208, %v206
    %v241 = vpack.c.b16 %v209, %v207
    %274 = vmatprep.subr.bf16.mxu0 %v211
    %275 = vmatpush1.bf16.msra.mxu0 %v210
    %276 = vmatprep.subr.bf16.mxu0 %v213
    %277 = vmatpush1.bf16.msra.mxu0 %v212
    %278 = vmatprep.subr.bf16.mxu0 %v215
    %279 = vmatpush1.bf16.msra.mxu0 %v214
    %280 = vmatprep.subr.bf16.mxu0 %v217
    %281 = vmatpush1.bf16.msra.mxu0 %v216
    %282 = vmatprep.subr.bf16.mxu0 %v219
    %283 = vmatpush1.bf16.msra.mxu0 %v218
    %284 = vmatprep.subr.bf16.mxu0 %v221
    %285 = vmatpush1.bf16.msra.mxu0 %v220
    %286 = vmatprep.subr.bf16.mxu0 %v223
    %287 = vmatpush1.bf16.msra.mxu0 %v222
    %288 = vmatprep.subr.bf16.mxu0 %v225
    %289 = vmatpush1.bf16.msra.mxu0 %v224
    %290 = vmatprep.subr.bf16.mxu0 %v227
    %291 = vmatpush1.bf16.msra.mxu0 %v226
    %292 = vmatprep.subr.bf16.mxu0 %v229
    %293 = vmatpush1.bf16.msra.mxu0 %v228
    %294 = vmatprep.subr.bf16.mxu0 %v231
    %295 = vmatpush1.bf16.msra.mxu0 %v230
    %296 = vmatprep.subr.bf16.mxu0 %v233
    %297 = vmatpush1.bf16.msra.mxu0 %v232
    %298 = vmatprep.subr.bf16.mxu0 %v235
    %299 = vmatpush1.bf16.msra.mxu0 %v234
    %300 = vmatprep.subr.bf16.mxu0 %v237
    %301 = vmatpush1.bf16.msra.mxu0 %v236
    %302 = vmatprep.subr.bf16.mxu0 %v239
    %303 = vmatpush1.bf16.msra.mxu0 %v238
    %304 = vmatprep.subr.bf16.mxu0 %v241
    %305 = vmatpush1.bf16.msra.mxu0 %v240
    %306 = vmatprep.mubr.bf16.mxu0 %v81
    %307 = vmatmul.mubr.bf16.gmra.mrb[0].mxu0 %v79
    %v308 = vpop.f32.mrb[0].mxu0
    %v309 = vadd.f32 0.0, %v308
    %v310 = vpop.f32.mrb[0].mxu0
    %v311 = vadd.f32 0.0, %v310
    %v312 = vpop.f32.mrb[0].mxu0
    %v313 = vpop.f32.mrb[0].mxu0
    %314 = vdwg.mxu0
    %v315 = vmul.f32 %v309, %v309
    %v316 = vsub.f32 %v311, %v315
    %v317 = vmax.f32 %v316, 0.0
    %v318 = vsub.f32 %v78, %v309
    %v319 = vadd.f32 %v317, 1e-05
    %v320 = vrsqrt.pop %v319
    %v321 = vmul.f32 %v318, %v320
    %v322 = vpack.c.bf16 %v321, %v321
    %v323 = vld [vmem:[#allocation7] sm:$0xff]
    %v324 = vld [vmem:[#allocation7 + $0x8] sm:$0xff]
    %v325 = vld [vmem:[#allocation7 + $0x10] sm:$0xff]
    %v326 = vld [vmem:[#allocation7 + $0x18] sm:$0xff]
    %v327 = vld [vmem:[#allocation7 + $0x20] sm:$0xff]
    %v328 = vld [vmem:[#allocation7 + $0x28] sm:$0xff]
    %v329 = vld [vmem:[#allocation7 + $0x30] sm:$0xff]
    %v330 = vld [vmem:[#allocation7 + $0x38] sm:$0xff]
    %v331 = vld [vmem:[#allocation7 + $0x40] sm:$0xff]
    %v332 = vld [vmem:[#allocation7 + $0x48] sm:$0xff]
    %v333 = vld [vmem:[#allocation7 + $0x50] sm:$0xff]
    %v334 = vld [vmem:[#allocation7 + $0x58] sm:$0xff]
    %v335 = vld [vmem:[#allocation7 + $0x60] sm:$0xff]
    %v336 = vld [vmem:[#allocation7 + $0x68] sm:$0xff]
    %v337 = vld [vmem:[#allocation7 + $0x70] sm:$0xff]
    %v338 = vld [vmem:[#allocation7 + $0x78] sm:$0xff]
    %v339 = vld [vmem:[%s3] sm:$0x3]
    %v341 = vlaneseq
    %v342 = vshrl.u32 %v341, 7
    %v343 = vsub.s32 0, %v342
    %v344 = vrot.slane %v339, %v343
    %v345 = vlaneseq
    %v346 = vshrl.u32 %v345, 7
    %v347 = vsub.s32 1, %v346
    %v348 = vrot.slane %v339, %v347
    %v367 = vunpack.c.l.b16 %v323
    %v368 = vunpack.c.h.b16 %v323
    %v369 = vunpack.c.l.b16 %v324
    %v370 = vunpack.c.h.b16 %v324
    %v371 = vunpack.c.l.b16 %v325
    %v372 = vunpack.c.h.b16 %v325
    %v373 = vunpack.c.l.b16 %v326
    %v374 = vunpack.c.h.b16 %v326
    %v375 = vunpack.c.l.b16 %v327
    %v376 = vunpack.c.h.b16 %v327
    %v377 = vunpack.c.l.b16 %v328
    %v378 = vunpack.c.h.b16 %v328
    %v379 = vunpack.c.l.b16 %v329
    %v380 = vunpack.c.h.b16 %v329
    %v381 = vunpack.c.l.b16 %v330
    %v382 = vunpack.c.h.b16 %v330
    %v383 = vunpack.c.l.b16 %v331
    %v384 = vunpack.c.h.b16 %v331
    %v385 = vunpack.c.l.b16 %v332
    %v386 = vunpack.c.h.b16 %v332
    %v387 = vunpack.c.l.b16 %v333
    %v388 = vunpack.c.h.b16 %v333
    %v389 = vunpack.c.l.b16 %v334
    %v390 = vunpack.c.h.b16 %v334
    %v391 = vunpack.c.l.b16 %v335
    %v392 = vunpack.c.h.b16 %v335
    %v393 = vunpack.c.l.b16 %v336
    %v394 = vunpack.c.h.b16 %v336
    %v395 = vunpack.c.l.b16 %v337
    %v396 = vunpack.c.h.b16 %v337
    %v397 = vunpack.c.l.b16 %v338
    %v398 = vunpack.c.h.b16 %v338
    %v399 = vpack.c.b16 %v369, %v367
    %v400 = vpack.c.b16 %v370, %v368
    %v401 = vpack.c.b16 %v373, %v371
    %v402 = vpack.c.b16 %v374, %v372
    %v403 = vpack.c.b16 %v377, %v375
    %v404 = vpack.c.b16 %v378, %v376
    %v405 = vpack.c.b16 %v381, %v379
    %v406 = vpack.c.b16 %v382, %v380
    %v407 = vpack.c.b16 %v385, %v383
    %v408 = vpack.c.b16 %v386, %v384
    %v409 = vpack.c.b16 %v389, %v387
    %v410 = vpack.c.b16 %v390, %v388
    %v411 = vpack.c.b16 %v393, %v391
    %v412 = vpack.c.b16 %v394, %v392
    %v413 = vpack.c.b16 %v397, %v395
    %v414 = vpack.c.b16 %v398, %v396
    %431 = vmatprep.subr.bf16.mxu0 %v400
    %432 = vmatpush1.bf16.msra.mxu0 %v399
    %433 = vmatprep.subr.bf16.mxu0 %v402
    %434 = vmatpush1.bf16.msra.mxu0 %v401
    %435 = vmatprep.subr.bf16.mxu0 %v404
    %436 = vmatpush1.bf16.msra.mxu0 %v403
    %437 = vmatprep.subr.bf16.mxu0 %v406
    %438 = vmatpush1.bf16.msra.mxu0 %v405
    %439 = vmatprep.subr.bf16.mxu0 %v408
    %440 = vmatpush1.bf16.msra.mxu0 %v407
    %441 = vmatprep.subr.bf16.mxu0 %v410
    %442 = vmatpush1.bf16.msra.mxu0 %v409
    %443 = vmatprep.subr.bf16.mxu0 %v412
    %444 = vmatpush1.bf16.msra.mxu0 %v411
    %445 = vmatprep.subr.bf16.mxu0 %v414
    %446 = vmatpush1.bf16.msra.mxu0 %v413
    %447 = vmatprep.subr.bf16.mxu0 0
    %448 = vmatpush1.bf16.msra.mxu0 0
    %449 = vmatprep.subr.bf16.mxu0 0
    %450 = vmatpush1.bf16.msra.mxu0 0
    %451 = vmatprep.subr.bf16.mxu0 0
    %452 = vmatpush1.bf16.msra.mxu0 0
    %453 = vmatprep.subr.bf16.mxu0 0
    %454 = vmatpush1.bf16.msra.mxu0 0
    %455 = vmatprep.subr.bf16.mxu0 0
    %456 = vmatpush1.bf16.msra.mxu0 0
    %457 = vmatprep.subr.bf16.mxu0 0
    %458 = vmatpush1.bf16.msra.mxu0 0
    %459 = vmatprep.subr.bf16.mxu0 0
    %460 = vmatpush1.bf16.msra.mxu0 0
    %461 = vmatprep.subr.bf16.mxu0 0
    %462 = vmatpush1.bf16.msra.mxu0 0
    %463 = vmatprep.mubr.bf16.mxu0 0
    %464 = vmatmul.mubr.bf16.gmra.mrb[0].mxu0 %v322
    %v465 = vpop.f32.mrb[0].mxu0
    %v466 = vadd.f32 %v344, %v465
    %v467 = vpop.f32.mrb[0].mxu0
    %v468 = vadd.f32 %v348, %v467
    %v469 = vpop.f32.mrb[0].mxu0
    %v470 = vpop.f32.mrb[0].mxu0
    %471 = vdwg.mxu0
    %v472 = vmax.f32 %v466, 0.0
    %v473 = vmax.f32 %v468, 0.0
    %v474 = vpack.c.bf16 %v472, %v472
    %v475 = vpack.c.bf16 %v473, %v473
    %v476 = vld [vmem:[#allocation8] sm:$0xf]
    %v477 = vld [vmem:[#allocation8 + $0x4] sm:$0xf]
    %v478 = vld [vmem:[#allocation8 + $0x8] sm:$0xf]
    %v479 = vld [vmem:[#allocation8 + $0xc] sm:$0xf]
    %v480 = vld [vmem:[#allocation8 + $0x10] sm:$0xf]
    %v481 = vld [vmem:[#allocation8 + $0x14] sm:$0xf]
    %v482 = vld [vmem:[#allocation8 + $0x18] sm:$0xf]
    %v483 = vld [vmem:[#allocation8 + $0x1c] sm:$0xf]
    %v484 = vld [vmem:[#allocation8 + $0x20] sm:$0xf]
    %v485 = vld [vmem:[#allocation8 + $0x24] sm:$0xf]
    %v486 = vld [vmem:[#allocation8 + $0x28] sm:$0xf]
    %v487 = vld [vmem:[#allocation8 + $0x2c] sm:$0xf]
    %v488 = vld [vmem:[#allocation8 + $0x30] sm:$0xf]
    %v489 = vld [vmem:[#allocation8 + $0x34] sm:$0xf]
    %v490 = vld [vmem:[#allocation8 + $0x38] sm:$0xf]
    %v491 = vld [vmem:[#allocation8 + $0x3c] sm:$0xf]
    %v492 = vld [vmem:[#allocation8 + $0x40] sm:$0xf]
    %v493 = vld [vmem:[#allocation8 + $0x44] sm:$0xf]
    %v494 = vld [vmem:[#allocation8 + $0x48] sm:$0xf]
    %v495 = vld [vmem:[#allocation8 + $0x4c] sm:$0xf]
    %v496 = vld [vmem:[#allocation8 + $0x50] sm:$0xf]
    %v497 = vld [vmem:[#allocation8 + $0x54] sm:$0xf]
    %v498 = vld [vmem:[#allocation8 + $0x58] sm:$0xf]
    %v499 = vld [vmem:[#allocation8 + $0x5c] sm:$0xf]
    %v500 = vld [vmem:[#allocation8 + $0x60] sm:$0xf]
    %v501 = vld [vmem:[#allocation8 + $0x64] sm:$0xf]
    %v502 = vld [vmem:[#allocation8 + $0x68] sm:$0xf]
    %v503 = vld [vmem:[#allocation8 + $0x6c] sm:$0xf]
    %v504 = vld [vmem:[#allocation8 + $0x70] sm:$0xf]
    %v505 = vld [vmem:[#allocation8 + $0x74] sm:$0xf]
    %v506 = vld [vmem:[#allocation8 + $0x78] sm:$0xf]
    %v507 = vld [vmem:[#allocation8 + $0x7c] sm:$0xf]
    %v508 = vld [vmem:[%s5] sm:$0x1]
    %v510 = vlaneseq
    %v511 = vshrl.u32 %v510, 7
    %v512 = vsub.s32 0, %v511
    %v513 = vrot.slane %v508, %v512
    %v547 = vunpack.c.l.b16 %v476
    %v548 = vunpack.c.l.b16 %v477
    %v549 = vunpack.c.l.b16 %v478
    %v550 = vunpack.c.l.b16 %v479
    %v551 = vunpack.c.l.b16 %v480
    %v552 = vunpack.c.l.b16 %v481
    %v553 = vunpack.c.l.b16 %v482
    %v554 = vunpack.c.l.b16 %v483
    %v555 = vunpack.c.l.b16 %v484
    %v556 = vunpack.c.l.b16 %v485
    %v557 = vunpack.c.l.b16 %v486
    %v558 = vunpack.c.l.b16 %v487
    %v559 = vunpack.c.l.b16 %v488
    %v560 = vunpack.c.l.b16 %v489
    %v561 = vunpack.c.l.b16 %v490
    %v562 = vunpack.c.l.b16 %v491
    %v563 = vunpack.c.l.b16 %v492
    %v564 = vunpack.c.l.b16 %v493
    %v565 = vunpack.c.l.b16 %v494
    %v566 = vunpack.c.l.b16 %v495
    %v567 = vunpack.c.l.b16 %v496
    %v568 = vunpack.c.l.b16 %v497
    %v569 = vunpack.c.l.b16 %v498
    %v570 = vunpack.c.l.b16 %v499
    %v571 = vunpack.c.l.b16 %v500
    %v572 = vunpack.c.l.b16 %v501
    %v573 = vunpack.c.l.b16 %v502
    %v574 = vunpack.c.l.b16 %v503
    %v575 = vunpack.c.l.b16 %v504
    %v576 = vunpack.c.l.b16 %v505
    %v577 = vunpack.c.l.b16 %v506
    %v578 = vunpack.c.l.b16 %v507
    %v579 = vpack.c.b16 %v548, %v547
    %v580 = vpack.c.b16 %v550, %v549
    %v581 = vpack.c.b16 %v552, %v551
    %v582 = vpack.c.b16 %v554, %v553
    %v583 = vpack.c.b16 %v556, %v555
    %v584 = vpack.c.b16 %v558, %v557
    %v585 = vpack.c.b16 %v560, %v559
    %v586 = vpack.c.b16 %v562, %v561
    %v587 = vpack.c.b16 %v564, %v563
    %v588 = vpack.c.b16 %v566, %v565
    %v589 = vpack.c.b16 %v568, %v567
    %v590 = vpack.c.b16 %v570, %v569
    %v591 = vpack.c.b16 %v572, %v571
    %v592 = vpack.c.b16 %v574, %v573
    %v593 = vpack.c.b16 %v576, %v575
    %v594 = vpack.c.b16 %v578, %v577
    %611 = vmatprep.subr.bf16.mxu0 0
    %612 = vmatpush1.bf16.msra.mxu0 %v579
    %613 = vmatprep.subr.bf16.mxu0 0
    %614 = vmatpush1.bf16.msra.mxu0 %v580
    %615 = vmatprep.subr.bf16.mxu0 0
    %616 = vmatpush1.bf16.msra.mxu0 %v581
    %617 = vmatprep.subr.bf16.mxu0 0
    %618 = vmatpush1.bf16.msra.mxu0 %v582
    %619 = vmatprep.subr.bf16.mxu0 0
    %620 = vmatpush1.bf16.msra.mxu0 %v583
    %621 = vmatprep.subr.bf16.mxu0 0
    %622 = vmatpush1.bf16.msra.mxu0 %v584
    %623 = vmatprep.subr.bf16.mxu0 0
    %624 = vmatpush1.bf16.msra.mxu0 %v585
    %625 = vmatprep.subr.bf16.mxu0 0
    %626 = vmatpush1.bf16.msra.mxu0 %v586
    %627 = vmatprep.subr.bf16.mxu0 0
    %628 = vmatpush1.bf16.msra.mxu0 %v587
    %629 = vmatprep.subr.bf16.mxu0 0
    %630 = vmatpush1.bf16.msra.mxu0 %v588
    %631 = vmatprep.subr.bf16.mxu0 0
    %632 = vmatpush1.bf16.msra.mxu0 %v589
    %633 = vmatprep.subr.bf16.mxu0 0
    %634 = vmatpush1.bf16.msra.mxu0 %v590
    %635 = vmatprep.subr.bf16.mxu0 0
    %636 = vmatpush1.bf16.msra.mxu0 %v591
    %637 = vmatprep.subr.bf16.mxu0 0
    %638 = vmatpush1.bf16.msra.mxu0 %v592
    %639 = vmatprep.subr.bf16.mxu0 0
    %640 = vmatpush1.bf16.msra.mxu0 %v593
    %641 = vmatprep.subr.bf16.mxu0 0
    %642 = vmatpush1.bf16.msra.mxu0 %v594
    %643 = vmatprep.mubr.bf16.mxu0 %v475
    %644 = vmatmul.mubr.bf16.gmra.mrb[0].mxu0 %v474
    %v645 = vpop.f32.mrb[0].mxu0
    %v646 = vadd.f32 %v513, %v645
    %v647 = vpop.f32.mrb[0].mxu0
    %v648 = vpop.f32.mrb[0].mxu0
    %v649 = vpop.f32.mrb[0].mxu0
    %650 = vdwg.mxu0
    %v651 = vadd.f32 %v646, %v78
    %652 = vst [vmem:[#allocation10] sm:$0xff] %v651
    // Predicated region
    $region42: #{tpu_custom_call.1} parent=1 // pred_check
      _
    $region43: #{tpu_custom_call.1} parent=1 // pred_check_branch
      %654 = sbr.rel (0) target = $region45
    $region44: #{tpu_custom_call.1} parent=1 // pred_region
      %s656 = ssub.s32 128, 128
      %657 = vsyncadd [#allocation4], %s656
      %s659 = sshll.u32 [#allocation10], 4
      %s660 = int_to_ptr.vmem [resolvable:$true] %s659
      %662 = dma.vmem_to_hbm [thread:$0]  %s660, 128, %s6, [#allocation4]
    $region45: #{tpu_custom_call.1} parent=1 // pred_fallthru
      _
    // Predicated region
    $region46: #{tpu_custom_call.1} parent=1 // pred_check
      _
    $region47: #{tpu_custom_call.1} parent=1 // pred_check_branch
      %664 = sbr.rel (0) target = $region49
    $region48: #{tpu_custom_call.1} parent=1 // pred_region
      %665 = dma.done [#allocation4], 128
    $region49: #{tpu_custom_call.1} parent=1 // pred_fallthru
      _
    %666 = vsyncpa [#allocation3], 1
    %667 = vsyncpa [#allocation6], 1
    %668 = vsyncpa [#allocation9], 1
    %669 = vsyncpa [#allocation4], 1

</llo_original>
